<compile_context>
chip_gen: v7x
topology: tpu7x:2x2x1
jax: 0.10.0
libtpu: 0.0.40
codegen_flags: <defaults>
</compile_context>

<pallas_src>
import functools

import jax
import jax.numpy as jnp
from jax.experimental import pallas as pl
from jax.experimental.pallas import tpu as pltpu

_LANES = 128
_SUBLANES = 8


def _chunk_ssd(pred_ref, targ_ref, *, chunk_rows, n_chunks, unroll,
               row0=None, rows=None):
    """Fold sum((pred-target)^2) over this tile into an (8,128) f32 value.

    Processes the tile in `chunk_rows`-row slices so elementwise temporaries
    stay vreg-sized.  If row0/rows are given, rows >= `rows` are masked to 0
    (partial boundary tile / overshot clamped tile).
    """

    def body(g, acc):
        start = pl.multiple_of(g * chunk_rows, chunk_rows)
        d = (pred_ref[pl.ds(start, chunk_rows), :].astype(jnp.float32)
             - targ_ref[pl.ds(start, chunk_rows), :].astype(jnp.float32))
        d2 = d * d
        if row0 is not None:
            rid = (jax.lax.broadcasted_iota(jnp.int32, (chunk_rows, _LANES), 0)
                   + row0 + start)
            d2 = jnp.where(rid < rows, d2, jnp.float32(0.0))
        # VPU-only fold of the chunk's sublane groups into one vreg shape.
        return acc + d2.reshape(chunk_rows // _SUBLANES, _SUBLANES,
                                _LANES).sum(axis=0)

    init = jnp.zeros((_SUBLANES, _LANES), jnp.float32)
    return jax.lax.fori_loop(0, n_chunks, body, init, unroll=unroll)


def _ssd_kernel(pred_ref, targ_ref, out_ref, *, block_rows, chunk_rows,
                n_chunks, unroll, rows, inner_blocks, needs_mask):
    """Accumulate sum((pred - target)^2) for this core's row range.

    out_ref is a (1, 8, 128) f32 block resident in VMEM across the inner
    ("arbitrary") grid axis: the per-core vector accumulator.
    """
    c = pl.program_id(0)   # core split (parallel)
    j = pl.program_id(1)   # row-tile index within this core (arbitrary)

    @pl.when(j == 0)
    def _():
        out_ref[...] = jnp.zeros_like(out_ref)

    if needs_mask:
        # Logical (unclamped) first row of this step.  Rows at/above `rows`
        # are DMA padding of the boundary tile or re-reads of the last tile
        # from overshot (clamped) steps: masked to zero, but only on the rare
        # boundary steps -- hot steps take the unmasked branch.
        row0 = (c * inner_blocks + j) * block_rows
        is_boundary = row0 + block_rows > rows

        @pl.when(is_boundary)
        def _():
            out_ref[...] += _chunk_ssd(
                pred_ref, targ_ref, chunk_rows=chunk_rows, n_chunks=n_chunks,
                unroll=unroll, row0=row0, rows=rows)[None, :, :]

        @pl.when(jnp.logical_not(is_boundary))
        def _():
            out_ref[...] += _chunk_ssd(
                pred_ref, targ_ref, chunk_rows=chunk_rows, n_chunks=n_chunks,
                unroll=unroll)[None, :, :]
    else:
        out_ref[...] += _chunk_ssd(
            pred_ref, targ_ref, chunk_rows=chunk_rows, n_chunks=n_chunks,
            unroll=unroll)[None, :, :]


def psnr_loss(pred, target, weight=1.0, *, block_rows=8192):
    assert pred.shape == target.shape
    n_elem = pred.size  # true element count (mean divides by this)

    # Flatten in native dtype (free reshape; no wrapper-side cast/copy).
    p = pred.reshape(-1)
    t = target.reshape(-1)

    itemsize = p.dtype.itemsize
    # Sublane multiple required by the packed tile of the input dtype.
    sub_mult = {4: 8, 2: 16, 1: 32}.get(itemsize, _SUBLANES)

    # Kernel handles the aligned prefix: rows is a multiple of sub_mult, so
    # every block shape is legally tileable.  The tiny remainder
    # (< sub_mult*128 + 128 elements) is reduced in the wrapper -- no full
    # array jnp.pad / copy.
    rows = ((n_elem // _LANES) // sub_mult) * sub_mult
    n_main = rows * _LANES
    tail = n_elem - n_main

    tail_ssd = jnp.float32(0.0)
    if tail:
        dt = p[n_main:].astype(jnp.float32) - t[n_main:].astype(jnp.float32)
        tail_ssd = jnp.sum(dt * dt)

    if rows == 0:
        ssd = tail_ssd
    else:
        # Row tile: big (amortize per-step overhead), multiple of sub_mult,
        # capped so 2 inputs x 2 buffers stays within ~40 MiB of scoped VMEM
        # on every generation (v7x physical VMEM is 64 MiB).
        max_rows_vmem = (40 << 20) // (4 * _LANES * itemsize)
        block_rows = min(int(block_rows), max_rows_vmem, rows)
        block_rows = max(sub_mult, (block_rows // sub_mult) * sub_mult)

        # Inner chunk (multiple of sub_mult, divides block_rows): keeps the
        # elementwise chain in vregs instead of multi-MiB VMEM temporaries.
        chunk_rows = block_rows
        for cand in (512, 256, 128, 64, 32, 16, 8):
            if sub_mult <= cand <= block_rows and block_rows % cand == 0:
                chunk_rows = cand
                break
        n_chunks = block_rows // chunk_rows
        unroll = True if n_chunks <= 16 else 8

        p2 = p[:n_main].reshape(rows, _LANES)
        t2 = t[:n_main].reshape(rows, _LANES)

        total_blocks = pl.cdiv(rows, block_rows)
        # Leading "parallel" axis: v7x's two TensorCores each stream half the
        # rows; sequential (and harmless) on 1-TC v5e/v6e.
        num_cores = 2 if total_blocks >= 2 else 1
        inner_blocks = pl.cdiv(total_blocks, num_cores)
        needs_mask = (num_cores * inner_blocks * block_rows) != rows

        last_block = total_blocks - 1

        def in_map(c, j):
            # Clamp so overshot steps re-read the last valid tile (their
            # contribution is masked to 0 in-kernel).
            return (jnp.minimum(c * inner_blocks + j, last_block), 0)

        kernel = functools.partial(
            _ssd_kernel, block_rows=block_rows, chunk_rows=chunk_rows,
            n_chunks=n_chunks, unroll=unroll, rows=rows,
            inner_blocks=inner_blocks, needs_mask=needs_mask)

        tile_bytes = block_rows * _LANES * itemsize
        # 2 inputs x 2 buffers + headroom; >= default on v6e/v7x, raises v5e's
        # 16 MiB scoped default, stays under v7x's 64 MiB physical VMEM.
        vmem_limit = int(min(48 << 20, max(32 << 20, 4 * tile_bytes + (8 << 20))))

        partials = pl.pallas_call(
            kernel,
            out_shape=jax.ShapeDtypeStruct((num_cores, _SUBLANES, _LANES),
                                           jnp.float32),
            grid_spec=pltpu.PrefetchScalarGridSpec(
                num_scalar_prefetch=0,
                grid=(num_cores, inner_blocks),
                in_specs=[
                    pl.BlockSpec((block_rows, _LANES), in_map),
                    pl.BlockSpec((block_rows, _LANES), in_map),
                ],
                out_specs=pl.BlockSpec((1, _SUBLANES, _LANES),
                                       lambda c, j: (c, 0, 0)),
            ),
            compiler_params=pltpu.CompilerParams(
                dimension_semantics=("parallel", "arbitrary"),
                vmem_limit_bytes=vmem_limit,
            ),
            cost_estimate=pl.CostEstimate(
                flops=3 * n_elem,
                transcendentals=0,
                bytes_accessed=2 * n_elem * itemsize),
        )(p2, t2)

        # Single cross-lane/sublane reduce + scalar log10 math in the wrapper.
        ssd = jnp.sum(partials) + tail_ssd

    mse = ssd / jnp.float32(n_elem) + jnp.float32(1e-8)
    return weight * -20.0 * jnp.log10(1.0 / jnp.sqrt(mse))


def psnr_loss_ref(pred, target, weight=1.0):
    mse = jnp.mean((pred.astype(jnp.float32)
                    - target.astype(jnp.float32)) ** 2) + 1e-08
    return weight * -20.0 * jnp.log10(1.0 / jnp.sqrt(mse))


if __name__ == "__main__":
    key = jax.random.PRNGKey(0)
    k1, k2 = jax.random.split(key)
    # NCHW, small shapes: batch=2, channels=4, spatial=16
    pred = jax.random.uniform(k1, (2, 4, 16, 16), dtype=jnp.float32)
    target = jax.random.uniform(k2, (2, 4, 16, 16), dtype=jnp.float32)

    out = psnr_loss(pred, target, weight=1.0)
    out = jax.block_until_ready(out)

    ref = psnr_loss_ref(pred, target, weight=1.0)
    assert jnp.allclose(out, ref, rtol=1e-5, atol=1e-5), (out, ref)
    print("KERNEL_OK")
</pallas_src>

<mosaic_0001>
module attributes {stable_mosaic.version = 11 : i64} {
  func.func @_ssd_kernel(%arg0: i32, %arg1: i32, %arg2: memref<16x128xf32, #tpu.memory_space<vmem>>, %arg3: memref<16x128xf32, #tpu.memory_space<vmem>>, %arg4: memref<1x8x128xf32, #tpu.memory_space<vmem>>) attributes {dimension_semantics = [#tpu.dimension_semantics<parallel>, #tpu.dimension_semantics<arbitrary>], iteration_bounds = array<i64: 1, 1>, scalar_prefetch = 0 : i64, scratch_operands = 0 : i64, tpu.core_type = #tpu.core_type<tc>, window_params = [{transform_indices = @transform_0, window_bounds = array<i64: 16, 128>}, {transform_indices = @transform_1, window_bounds = array<i64: 16, 128>}, {transform_indices = @transform_2, window_bounds = array<i64: 1, 8, 128>}]} {
    %c0_i32 = arith.constant 0 : i32
    %0 = arith.cmpi eq, %arg1, %c0_i32 : i32
    %1 = arith.extui %0 : i1 to i32
    %c0_i32_0 = arith.constant 0 : i32
    %2 = arith.cmpi ne, %1, %c0_i32_0 : i32
    scf.if %2 {
      %cst_10 = arith.constant 0.000000e+00 : f32
      %19 = vector.broadcast %cst_10 : f32 to vector<1x8x128xf32>
      %c0_11 = arith.constant 0 : index
      %c0_12 = arith.constant 0 : index
      %c0_13 = arith.constant 0 : index
      %20 = vector.load %arg4[%c0_11, %c0_12, %c0_13] : memref<1x8x128xf32, #tpu.memory_space<vmem>>, vector<1x8x128xf32>
      tpu.vector_store %arg4[%c0_11, %c0_12, %c0_13], %19 {strides = array<i32>} : memref<1x8x128xf32, #tpu.memory_space<vmem>>, vector<1x8x128xf32>,
    } else {
    }
    %c0 = arith.constant 0 : index
    %c0_1 = arith.constant 0 : index
    %c0_2 = arith.constant 0 : index
    %3 = vector.load %arg4[%c0, %c0_1, %c0_2] : memref<1x8x128xf32, #tpu.memory_space<vmem>>, vector<1x8x128xf32>
    %cst = arith.constant 0.000000e+00 : f32
    %4 = vector.broadcast %cst : f32 to vector<8x128xf32>
    %c0_i32_3 = arith.constant 0 : i32
    %c16_i32 = arith.constant 16 : i32
    %5 = arith.muli %c0_i32_3, %c16_i32 : i32
    %6 = tpu.assume_multiple %5, 16 : i32
    %7 = arith.index_cast %6 : i32 to index
    %c0_4 = arith.constant 0 : index
    %8 = vector.load %arg2[%7, %c0_4] : memref<16x128xf32, #tpu.memory_space<vmem>>, vector<16x128xf32>
    %9 = arith.index_cast %6 : i32 to index
    %c0_5 = arith.constant 0 : index
    %10 = vector.load %arg3[%9, %c0_5] : memref<16x128xf32, #tpu.memory_space<vmem>>, vector<16x128xf32>
    %11 = arith.subf %8, %10 : vector<16x128xf32>
    %12 = arith.mulf %11, %11 : vector<16x128xf32>
    %13 = vector.shape_cast %12 : vector<16x128xf32> to vector<2x8x128xf32>
    %cst_6 = arith.constant dense<0.000000e+00> : vector<8x128xf32>
    %14 = vector.multi_reduction <add>, %13, %cst_6 [0] : vector<2x8x128xf32> to vector<8x128xf32>
    %15 = arith.addf %4, %14 : vector<8x128xf32>
    %c1_i32 = arith.constant 1 : i32
    %16 = vector.shape_cast %15 : vector<8x128xf32> to vector<1x8x128xf32>
    %17 = arith.addf %3, %16 : vector<1x8x128xf32>
    %c0_7 = arith.constant 0 : index
    %c0_8 = arith.constant 0 : index
    %c0_9 = arith.constant 0 : index
    %18 = vector.load %arg4[%c0_7, %c0_8, %c0_9] : memref<1x8x128xf32, #tpu.memory_space<vmem>>, vector<1x8x128xf32>
    tpu.vector_store %arg4[%c0_7, %c0_8, %c0_9], %17 {strides = array<i32>} : memref<1x8x128xf32, #tpu.memory_space<vmem>>, vector<1x8x128xf32>,
    return
  }
  func.func @transform_0(%arg0: i32, %arg1: i32) -> (i32, i32) {
    %c1_i32 = arith.constant 1 : i32
    %0 = arith.muli %arg0, %c1_i32 : i32
    %1 = arith.addi %0, %arg1 : i32
    %c0_i32 = arith.constant 0 : i32
    %2 = arith.minsi %1, %c0_i32 : i32
    %c0_i32_0 = arith.constant 0 : i32
    %c0_i32_1 = arith.constant 0 : i32
    return %2, %c0_i32_0 : i32, i32
  }
  func.func @transform_1(%arg0: i32, %arg1: i32) -> (i32, i32) {
    %c1_i32 = arith.constant 1 : i32
    %0 = arith.muli %arg0, %c1_i32 : i32
    %1 = arith.addi %0, %arg1 : i32
    %c0_i32 = arith.constant 0 : i32
    %2 = arith.minsi %1, %c0_i32 : i32
    %c0_i32_0 = arith.constant 0 : i32
    %c0_i32_1 = arith.constant 0 : i32
    return %2, %c0_i32_0 : i32, i32
  }
  func.func @transform_2(%arg0: i32, %arg1: i32) -> (i32, i32, i32) {
    %c0_i32 = arith.constant 0 : i32
    %c0_i32_0 = arith.constant 0 : i32
    %c0_i32_1 = arith.constant 0 : i32
    return %arg0, %c0_i32, %c0_i32_0 : i32, i32, i32
  }
}

</mosaic_0001>

<llo_original>
// kernel: tpu_custom_call.1
$region0: #{tpu_custom_call.1}
  #allocation0 [shape = 'u32[]', space=smem, size = 0x4, offset = 0x4, fixed_abs, tag = 'smem constant byte address 0x4 - core index']
  #allocation1 [shape = 'u32[144,128]{1,0:T(1,128)}', space=vmem, size = 0x12000, scoped, tag = 'internal scratch']
  %s0 = inlined_call_operand.hbm [shape: f32[16,128], index: 0, kind: input, shape index: {}]
  %s1 = inlined_call_operand.hbm [shape: f32[16,128], index: 1, kind: input, shape index: {}]
  %s2 = inlined_call_operand.hbm [shape: f32[1,8,128], index: 2, kind: output, shape index: {}]
  %s3 = sld [smem:[#allocation0]]
  $region30: #{tpu_custom_call.1} parent=0
    _
  %s5 = ssub.s32 1, %s3
  %s6 = scalar_select 0, %s5, %s3
  $region1: #{tpu_custom_call.1} parent=0
    #allocation2 [shape = 'u8[8192]{0}', space=vmem, size = 0x2000, scoped, tag = 'input window, operand 0, single buffered']
    #allocation3 [shape = 's32[1]{0}', space=sflag, size = 0x4, scoped, tag = 'scoped memory for tpu_custom_call.1']
    #allocation4 [shape = 's32[1]{0}', space=sflag, size = 0x4, scoped, tag = 'scoped memory for tpu_custom_call.1']
    #allocation5 [shape = 'u8[8192]{0}', space=vmem, size = 0x2000, scoped, tag = 'input window, operand 1, single buffered']
    #allocation6 [shape = 's32[1]{0}', space=sflag, size = 0x4, scoped, tag = 'scoped memory for tpu_custom_call.1']
    #allocation7 [shape = 'u8[4096]{0}', space=vmem, size = 0x1000, scoped, tag = 'output window, operand 0, single buffered']
    %7 = vsyncpa [#allocation3], 0
    %8 = vsyncpa [#allocation6], 0
    %9 = vsyncpa [#allocation4], 0
    // Predicated region
    $region2: #{tpu_custom_call.1} parent=1 // pred_check
      _
    $region3: #{tpu_custom_call.1} parent=1 // pred_check_branch
      %11 = sbr.rel (0) target = $region5
    $region4: #{tpu_custom_call.1} parent=1 // pred_region
      %s12 = sadd.s32 0, 0
      %p13 = scmp.lt.s32.totalorder %s12, 0
      %s14 = scalar_select %p13, %s12, 0
      %s15 = smul.u32 2, %s14
      %s17 = ssub.s32 256, 256
      %18 = vsyncadd [#allocation3], %s17
      %s19 = smul.addr %s15, 128
      %s20 = scalar_lea.hbm %s0, %s19
      %s21 = sshll.u32 [#allocation2], 4
      %s22 = int_to_ptr.vmem [resolvable:$true] %s21
      %27 = dma.hbm_to_vmem [thread:$0]  %s20, 256, %s22, [#allocation3], 128, 128, 8
    $region5: #{tpu_custom_call.1} parent=1 // pred_fallthru
      _
    // Predicated region
    $region6: #{tpu_custom_call.1} parent=1 // pred_check
      _
    $region7: #{tpu_custom_call.1} parent=1 // pred_check_branch
      %29 = sbr.rel (0) target = $region9
    $region8: #{tpu_custom_call.1} parent=1 // pred_region
      %s30 = sadd.s32 0, 0
      %p31 = scmp.lt.s32.totalorder %s30, 0
      %s32 = scalar_select %p31, %s30, 0
      %s33 = smul.u32 2, %s32
      %s35 = ssub.s32 256, 256
      %36 = vsyncadd [#allocation6], %s35
      %s37 = smul.addr %s33, 128
      %s38 = scalar_lea.hbm %s1, %s37
      %s39 = sshll.u32 [#allocation5], 4
      %s40 = int_to_ptr.vmem [resolvable:$true] %s39
      %45 = dma.hbm_to_vmem [thread:$0]  %s38, 256, %s40, [#allocation6], 128, 128, 8
    $region9: #{tpu_custom_call.1} parent=1 // pred_fallthru
      _
    // Predicated region
    $region10: #{tpu_custom_call.1} parent=1 // pred_check
      _
    $region11: #{tpu_custom_call.1} parent=1 // pred_check_branch
      %47 = sbr.rel (0) target = $region13
    $region12: #{tpu_custom_call.1} parent=1 // pred_region
      %48 = dma.done [#allocation3], 256
    $region13: #{tpu_custom_call.1} parent=1 // pred_fallthru
      _
    // Predicated region
    $region14: #{tpu_custom_call.1} parent=1 // pred_check
      _
    $region15: #{tpu_custom_call.1} parent=1 // pred_check_branch
      %50 = sbr.rel (0) target = $region17
    $region16: #{tpu_custom_call.1} parent=1 // pred_region
      %51 = dma.done [#allocation6], 256
    $region17: #{tpu_custom_call.1} parent=1 // pred_fallthru
      _
    %s52 = sadd.s32 0, 0
    %p53 = scmp.lt.s32.totalorder %s52, 0
    %s54 = scalar_select %p53, %s52, 0
    %s55 = smul.u32 2, %s54
    %s56 = sadd.s32 0, 0
    %p57 = scmp.lt.s32.totalorder %s56, 0
    %s58 = scalar_select %p57, %s56, 0
    %s59 = smul.u32 2, %s58
    %p60 = scmp.eq.s32.totalorder 0, 0
    // Predicated region
    $region18: #{tpu_custom_call.1} parent=1 // pred_check
      %p61 = pneg %p60
    $region19: #{tpu_custom_call.1} parent=1 // pred_check_branch
      %63 = sbr.rel (%p61) target = $region21
    $region20: #{tpu_custom_call.1} parent=1 // pred_region
      %64 = vst [vmem:[#allocation7] sm:$0xff] 0.0
    $region21: #{tpu_custom_call.1} parent=1 // pred_fallthru
      _
    %v65 = vld [vmem:[#allocation7] sm:$0xff]
    %v66 = vld [vmem:[#allocation2] sm:$0xff]
    %v67 = vld [vmem:[#allocation2 + $0x8] sm:$0xff]
    %v68 = vld [vmem:[#allocation5] sm:$0xff]
    %v69 = vld [vmem:[#allocation5 + $0x8] sm:$0xff]
    %v70 = vsub.f32 %v66, %v68
    %v71 = vsub.f32 %v67, %v69
    %v72 = vmul.f32 %v70, %v70
    %v73 = vmul.f32 %v71, %v71
    %v74 = vadd.f32 %v72, %v73
    %v75 = vadd.f32 %v74, 0.0
    %v76 = vadd.f32 %v65, %v75
    %77 = vst [vmem:[#allocation7] sm:$0xff] %v76
    // Predicated region
    $region22: #{tpu_custom_call.1} parent=1 // pred_check
      _
    $region23: #{tpu_custom_call.1} parent=1 // pred_check_branch
      %79 = sbr.rel (0) target = $region25
    $region24: #{tpu_custom_call.1} parent=1 // pred_region
      %s81 = ssub.s32 128, 128
      %82 = vsyncadd [#allocation4], %s81
      %s84 = sshll.u32 [#allocation7], 4
      %s85 = int_to_ptr.vmem [resolvable:$true] %s84
      %87 = dma.vmem_to_hbm [thread:$0]  %s85, 128, %s2, [#allocation4]
    $region25: #{tpu_custom_call.1} parent=1 // pred_fallthru
      _
    // Predicated region
    $region26: #{tpu_custom_call.1} parent=1 // pred_check
      _
    $region27: #{tpu_custom_call.1} parent=1 // pred_check_branch
      %89 = sbr.rel (0) target = $region29
    $region28: #{tpu_custom_call.1} parent=1 // pred_region
      %90 = dma.done [#allocation4], 128
    $region29: #{tpu_custom_call.1} parent=1 // pred_fallthru
      _
    %91 = vsyncpa [#allocation3], 1
    %92 = vsyncpa [#allocation6], 1
    %93 = vsyncpa [#allocation4], 1

</llo_original>
